<compile_context>
chip_gen: v5e
topology: v5e:2x2
jax: 0.10.0
libtpu: 0.0.40
codegen_flags: <defaults>
</compile_context>

<pallas_src>
import functools

import jax
import jax.numpy as jnp
from jax import lax
from jax.experimental import pallas as pl
from jax.experimental.pallas import tpu as pltpu

_LANE = 128
_SUBLANE = 8
_MAX_TN = 8192   # cap row tile so the grid keeps enough steps to pipeline / megacore


def _round_up(x, m):
    return (x + m - 1) // m * m


def _query_vmem_capacity_bytes():
    """Physical VMEM per core (generation-aware); conservative fallback = v7x 64 MiB."""
    default = 64 * 1024 * 1024
    try:
        info = pltpu.get_tpu_info()
    except Exception:
        return default
    for name in ("vmem_capacity_bytes", "vmem_size_bytes", "vmem_bytes"):
        v = getattr(info, name, None)
        if isinstance(v, int) and v > 0:
            return v
    return default


_VMEM_PHYS_BYTES = _query_vmem_capacity_bytes()
# ~half of physical VMEM: 32 MiB on v7x (64 MiB phys), 64 MiB on v5e/v6e (128 MiB phys).
_VMEM_LIMIT_BYTES = min(96 * 1024 * 1024, max(32 * 1024 * 1024, _VMEM_PHYS_BYTES // 2))


def _weighted_ce_tile_kernel(w_ref, pred_ref, true_ref, out_ref, *, tn, tail):
    """One (tn, C) row tile -> one broadcast partial weighted-CE sum.

    w_ref    : (1, 1) float32 in SMEM (runtime weight scalar; 0.0 == plain CE mean)
    pred_ref : (tn, C) logits tile (bf16 or f32), last grid step may be partial
    true_ref : (tn, 1) int32 target class indices
    out_ref  : (8, 128) f32 tile; whole tile filled with this step's partial sum
    """
    logits = pred_ref[...].astype(jnp.float32)        # in-register upcast (bf16 ok)
    tgt = true_ref[...]                               # (tn, 1) int32
    w = w_ref[0, 0]

    # Numerically stable logsumexp over classes (XLU reductions + EUP exp/log,
    # both off the critical slots of this HBM-bound kernel).
    m = jnp.max(logits, axis=-1, keepdims=True)                           # (tn, 1)
    lse = jnp.log(jnp.sum(jnp.exp(logits - m), axis=-1, keepdims=True)) + m

    # Gather the target logit via a one-hot select (no dynamic gather on TPU).
    col = lax.broadcasted_iota(jnp.int32, logits.shape, 1)                # (tn, C)
    tgt_logit = jnp.sum(jnp.where(col == tgt, logits, 0.0),
                        axis=-1, keepdims=True)                           # (tn, 1)

    ce = lse - tgt_logit                                                  # (tn, 1)
    # Per-sample factor folded into the kernel: true * w + 1 (w = 0 -> plain mean CE).
    factor = tgt.astype(jnp.float32) * w + 1.0
    contrib = ce * factor                                                 # (tn, 1)

    def _emit(x):
        # Broadcast the partial into a full (8, 128) tile so the out BlockSpec respects
        # the (sublane, lane) tiling rule; the wrapper reads [0, 0] per tile.
        out_ref[...] = jnp.full((_SUBLANE, _LANE), jnp.sum(x), dtype=jnp.float32)

    if tail == tn:
        # Batch divides evenly: no row masking anywhere (fast path on every step).
        _emit(contrib)
    else:
        # Only the last grid step holds rows past the real batch size; its out-of-bounds
        # rows contain unspecified VMEM data, so select (not multiply) them away.
        is_last = pl.program_id(0) == pl.num_programs(0) - 1

        @pl.when(jnp.logical_not(is_last))
        def _():
            _emit(contrib)

        @pl.when(is_last)
        def _():
            row = lax.broadcasted_iota(jnp.int32, contrib.shape, 0)
            _emit(jnp.where(row < tail, contrib, 0.0))


def _forward(predict, true, w_arr):
    n, c = predict.shape

    # Keep bf16 logits as bf16 (halves HBM traffic); anything exotic -> f32.
    if predict.dtype not in (jnp.bfloat16, jnp.float32):
        predict = predict.astype(jnp.float32)
    true = true.astype(jnp.int32).reshape(n, 1)

    itemsize = predict.dtype.itemsize
    c_lanes = _round_up(c, _LANE)        # VMEM lane footprint of one logits row

    # Row-tile size from a generation-aware VMEM budget:
    #   2x double-buffered logits tile + ~3x f32 row temporaries (upcast/exp/one-hot)
    #   + 2x lane-padded (tn,1) int32 targets + a handful of lane-padded (tn,1) f32
    #   column temporaries (max / lse / ce / factor / ...).
    per_row = (2 * c_lanes * itemsize
               + 3 * c_lanes * 4
               + 2 * _LANE * 4
               + 8 * _LANE * 4)
    budget = int(_VMEM_LIMIT_BYTES * 0.6)
    tn = max(_SUBLANE, (budget // per_row) // _SUBLANE * _SUBLANE)
    # Keep at least 2 grid steps when there is enough work (v7x megacore) and never
    # tile past the (sublane-rounded) batch.
    tn = min(tn, _MAX_TN, max(_SUBLANE, _round_up(-(-n // 2), _SUBLANE)))
    # TODO(synk): for vocabulary-scale C (c_lanes*per-row bytes too big for even tn=8),
    # add a second ("arbitrary") grid axis over classes with an online-logsumexp carry.

    num_tiles = -(-n // tn)
    tail = n - (num_tiles - 1) * tn      # valid rows in the last (possibly ragged) tile

    kernel = functools.partial(_weighted_ce_tile_kernel, tn=tn, tail=tail)

    cost = pl.CostEstimate(
        flops=6 * n * c,
        transcendentals=2 * n * c,
        bytes_accessed=n * c * itemsize + n * 4 + num_tiles * _SUBLANE * _LANE * 4 + 4,
    )

    partials = pl.pallas_call(
        kernel,
        out_shape=jax.ShapeDtypeStruct((num_tiles * _SUBLANE, _LANE), jnp.float32),
        grid=(num_tiles,),
        in_specs=[
            pl.BlockSpec(memory_space=pltpu.MemorySpace.SMEM),   # (1,1) weight scalar
            pl.BlockSpec((tn, c), lambda i: (i, 0)),             # logits row tile (ragged ok)
            pl.BlockSpec((tn, 1), lambda i: (i, 0)),             # target class indices
        ],
        out_specs=pl.BlockSpec((_SUBLANE, _LANE), lambda i: (i, 0)),
        compiler_params=pltpu.CompilerParams(
            # Row tiles are independent partial sums -> "parallel" lets Mosaic shard
            # the grid across both TensorCores on v7x; harmless on v5e/v6e.
            dimension_semantics=("parallel",),
            vmem_limit_bytes=_VMEM_LIMIT_BYTES,
        ),
        cost_estimate=cost,
    )(w_arr, predict, true)

    tile_sums = partials.reshape(num_tiles, _SUBLANE, _LANE)[:, 0, 0]
    return jnp.sum(tile_sums) / jnp.float32(n)   # divide once by the global N


_forward_jit = jax.jit(_forward)


def weighted_multilabel(predict, true, weights=None):
    """JAX/Pallas equivalent of WeightedMultilabel.forward (scalar `weights` only)."""
    # TODO(synk): the PyTorch module's `true * self.weights + 1` only makes sense for a
    # scalar weight; per-class weight tensors are not supported here.
    w = 0.0 if weights is None else float(weights)
    w_arr = jnp.full((1, 1), w, dtype=jnp.float32)
    return _forward_jit(predict, true, w_arr)


def _reference(predict, true, weights=None):
    p = predict.astype(jnp.float32)
    lse = jax.scipy.special.logsumexp(p, axis=-1)
    tgt = jnp.take_along_axis(p, true.astype(jnp.int32)[:, None], axis=-1)[:, 0]
    ce = lse - tgt
    if weights is None:
        return jnp.mean(ce)
    return jnp.mean(ce * (true.astype(jnp.float32) * weights + 1.0))


if __name__ == "__main__":
    import numpy as np

    key = jax.random.PRNGKey(0)
    k1, k2, k3, k4 = jax.random.split(key, 4)

    # Case 1: ragged batch (13 rows, last tile partial) + non-128 class count.
    N1, C1 = 13, 32
    predict1 = jax.random.normal(k1, (N1, C1), dtype=jnp.float32)
    true1 = jax.random.randint(k2, (N1,), 0, C1, dtype=jnp.int32)

    loss_plain = weighted_multilabel(predict1, true1, weights=None)
    jax.block_until_ready(loss_plain)
    np.testing.assert_allclose(np.asarray(loss_plain),
                               np.asarray(_reference(predict1, true1, None)),
                               rtol=1e-5, atol=1e-5)

    loss_weighted = weighted_multilabel(predict1, true1, weights=0.5)
    jax.block_until_ready(loss_weighted)
    np.testing.assert_allclose(np.asarray(loss_weighted),
                               np.asarray(_reference(predict1, true1, 0.5)),
                               rtol=1e-5, atol=1e-5)

    # Case 2: evenly-divisible batch (fast, unmasked path).
    N2, C2 = 8, 32
    predict2 = jax.random.normal(k3, (N2, C2), dtype=jnp.float32)
    true2 = jax.random.randint(k4, (N2,), 0, C2, dtype=jnp.int32)
    loss_even = weighted_multilabel(predict2, true2, weights=0.25)
    jax.block_until_ready(loss_even)
    np.testing.assert_allclose(np.asarray(loss_even),
                               np.asarray(_reference(predict2, true2, 0.25)),
                               rtol=1e-5, atol=1e-5)

    # bf16 logits path (half the HBM traffic; kernel upcasts in-register).
    p_bf16 = predict1.astype(jnp.bfloat16)
    loss_bf16 = weighted_multilabel(p_bf16, true1, weights=0.5)
    jax.block_until_ready(loss_bf16)
    ref_bf16 = _reference(p_bf16.astype(jnp.float32), true1, 0.5)
    np.testing.assert_allclose(np.asarray(loss_bf16), np.asarray(ref_bf16),
                               rtol=2e-2, atol=2e-2)

    print("KERNEL_OK")
</pallas_src>

<mosaic_0001>
module attributes {stable_mosaic.version = 11 : i64} {
  func.func @_weighted_ce_tile_kernel(%arg0: i32, %arg1: memref<1x1xf32, #tpu.memory_space<smem>>, %arg2: memref<8x32xf32, #tpu.memory_space<vmem>>, %arg3: memref<8x1xi32, #tpu.memory_space<vmem>>, %arg4: memref<8x128xf32, #tpu.memory_space<vmem>>) attributes {dimension_semantics = [#tpu.dimension_semantics<parallel>], iteration_bounds = array<i64: 2>, scalar_prefetch = 0 : i64, scratch_operands = 0 : i64, tpu.core_type = #tpu.core_type<tc>, window_params = [{transform_indices = @transform_0, window_bounds = array<i64: 1, 1>}, {transform_indices = @transform_1, window_bounds = array<i64: 8, 32>}, {transform_indices = @transform_2, window_bounds = array<i64: 8, 1>}, {transform_indices = @transform_3, window_bounds = array<i64: 8, 128>}]} {
    %c0 = arith.constant 0 : index
    %c0_0 = arith.constant 0 : index
    %0 = vector.load %arg2[%c0, %c0_0] : memref<8x32xf32, #tpu.memory_space<vmem>>, vector<8x32xf32>
    %c0_1 = arith.constant 0 : index
    %c0_2 = arith.constant 0 : index
    %1 = vector.load %arg3[%c0_1, %c0_2] : memref<8x1xi32, #tpu.memory_space<vmem>>, vector<8x1xi32>
    %c0_3 = arith.constant 0 : index
    %c0_4 = arith.constant 0 : index
    %2 = memref.load %arg1[%c0_3, %c0_4] : memref<1x1xf32, #tpu.memory_space<smem>>
    %cst = arith.constant dense<0xFF800000> : vector<8xf32>
    %3 = vector.multi_reduction <maximumf>, %0, %cst [1] : vector<8x32xf32> to vector<8xf32>
    %4 = vector.shape_cast %3 : vector<8xf32> to vector<8x1xf32>
    %5 = vector.broadcast %4 : vector<8x1xf32> to vector<8x32xf32>
    %6 = arith.subf %0, %5 : vector<8x32xf32>
    %7 = math.exp %6 : vector<8x32xf32>
    %cst_5 = arith.constant dense<0.000000e+00> : vector<8xf32>
    %8 = vector.multi_reduction <add>, %7, %cst_5 [1] : vector<8x32xf32> to vector<8xf32>
    %9 = vector.shape_cast %8 : vector<8xf32> to vector<8x1xf32>
    %10 = math.log %9 : vector<8x1xf32>
    %11 = arith.addf %10, %4 : vector<8x1xf32>
    %12 = tpu.iota {dimensions = array<i32: 1>} : vector<8x32xi32>
    %13 = vector.broadcast %1 : vector<8x1xi32> to vector<8x32xi32>
    %14 = arith.cmpi eq, %12, %13 : vector<8x32xi32>
    %cst_6 = arith.constant 0.000000e+00 : f32
    %15 = vector.broadcast %cst_6 : f32 to vector<8x32xf32>
    %16 = arith.select %14, %0, %15 : vector<8x32xi1>, vector<8x32xf32>
    %cst_7 = arith.constant dense<0.000000e+00> : vector<8xf32>
    %17 = vector.multi_reduction <add>, %16, %cst_7 [1] : vector<8x32xf32> to vector<8xf32>
    %18 = vector.shape_cast %17 : vector<8xf32> to vector<8x1xf32>
    %19 = arith.subf %11, %18 : vector<8x1xf32>
    %20 = arith.sitofp %1 : vector<8x1xi32> to vector<8x1xf32>
    %21 = vector.broadcast %2 : f32 to vector<8x1xf32>
    %22 = arith.mulf %20, %21 : vector<8x1xf32>
    %cst_8 = arith.constant 1.000000e+00 : f32
    %23 = vector.broadcast %cst_8 : f32 to vector<8x1xf32>
    %24 = arith.addf %22, %23 : vector<8x1xf32>
    %25 = arith.mulf %19, %24 : vector<8x1xf32>
    %c1_i32 = arith.constant 1 : i32
    %26 = arith.cmpi eq, %arg0, %c1_i32 : i32
    %true = arith.constant true
    %27 = arith.xori %26, %true : i1
    %28 = arith.extui %27 : i1 to i32
    %c0_i32 = arith.constant 0 : i32
    %29 = arith.cmpi ne, %28, %c0_i32 : i32
    scf.if %29 {
      %32 = vector.shape_cast %25 : vector<8x1xf32> to vector<1x8x1xf32>
      %cst_10 = arith.constant dense<0.000000e+00> : vector<1xf32>
      %33 = vector.multi_reduction <add>, %32, %cst_10 [1, 2] : vector<1x8x1xf32> to vector<1xf32>
      %34 = vector.shape_cast %33 : vector<1xf32> to vector<1x1x1xf32>
      %35 = vector.extract %34[0, 0, 0] : f32 from vector<1x1x1xf32>
      %36 = vector.broadcast %35 : f32 to vector<8x128xf32>
      %c0_11 = arith.constant 0 : index
      %c0_12 = arith.constant 0 : index
      %37 = vector.load %arg4[%c0_11, %c0_12] : memref<8x128xf32, #tpu.memory_space<vmem>>, vector<8x128xf32>
      tpu.vector_store %arg4[%c0_11, %c0_12], %36 {strides = array<i32>} : memref<8x128xf32, #tpu.memory_space<vmem>>, vector<8x128xf32>,
    } else {
    }
    %30 = arith.extui %26 : i1 to i32
    %c0_i32_9 = arith.constant 0 : i32
    %31 = arith.cmpi ne, %30, %c0_i32_9 : i32
    scf.if %31 {
      %32 = tpu.iota {dimensions = array<i32: 0>} : vector<8x1xi32>
      %c5_i32 = arith.constant 5 : i32
      %33 = vector.broadcast %c5_i32 : i32 to vector<8x1xi32>
      %34 = arith.cmpi slt, %32, %33 : vector<8x1xi32>
      %cst_10 = arith.constant 0.000000e+00 : f32
      %35 = vector.broadcast %cst_10 : f32 to vector<8x1xf32>
      %36 = arith.select %34, %25, %35 : vector<8x1xi1>, vector<8x1xf32>
      %37 = vector.shape_cast %36 : vector<8x1xf32> to vector<1x8x1xf32>
      %cst_11 = arith.constant dense<0.000000e+00> : vector<1xf32>
      %38 = vector.multi_reduction <add>, %37, %cst_11 [1, 2] : vector<1x8x1xf32> to vector<1xf32>
      %39 = vector.shape_cast %38 : vector<1xf32> to vector<1x1x1xf32>
      %40 = vector.extract %39[0, 0, 0] : f32 from vector<1x1x1xf32>
      %41 = vector.broadcast %40 : f32 to vector<8x128xf32>
      %c0_12 = arith.constant 0 : index
      %c0_13 = arith.constant 0 : index
      %42 = vector.load %arg4[%c0_12, %c0_13] : memref<8x128xf32, #tpu.memory_space<vmem>>, vector<8x128xf32>
      tpu.vector_store %arg4[%c0_12, %c0_13], %41 {strides = array<i32>} : memref<8x128xf32, #tpu.memory_space<vmem>>, vector<8x128xf32>,
    } else {
    }
    return
  }
  func.func @transform_0(%arg0: i32) -> (i32, i32) {
    %c0_i32 = arith.constant 0 : i32
    %c0_i32_0 = arith.constant 0 : i32
    %c0_i32_1 = arith.constant 0 : i32
    return %c0_i32, %c0_i32_0 : i32, i32
  }
  func.func @transform_1(%arg0: i32) -> (i32, i32) {
    %c0_i32 = arith.constant 0 : i32
    %c0_i32_0 = arith.constant 0 : i32
    return %arg0, %c0_i32 : i32, i32
  }
  func.func @transform_2(%arg0: i32) -> (i32, i32) {
    %c0_i32 = arith.constant 0 : i32
    %c0_i32_0 = arith.constant 0 : i32
    return %arg0, %c0_i32 : i32, i32
  }
  func.func @transform_3(%arg0: i32) -> (i32, i32) {
    %c0_i32 = arith.constant 0 : i32
    %c0_i32_0 = arith.constant 0 : i32
    return %arg0, %c0_i32 : i32, i32
  }
}

</mosaic_0001>

<llo_original>
// kernel: _forward.1
$region0: #{_forward.1}
  #allocation0 [shape = 'u32[]', space=smem, size = 0x4, offset = 0x4, fixed_abs, tag = 'smem constant byte address 0x4 - core index']
  #allocation1 [shape = 'u32[72,128]{1,0:T(1,128)}', space=vmem, size = 0x9000, scoped, tag = 'internal scratch']
  #allocation2 [shape = 'f32[1,1]{1,0:T(1,128)S(6)}', space=smem, size = 0x200, scoped, tag = 'scoped memory for _forward.1']
  %s0 = inlined_call_operand.<no memory space> [shape: f32[1,1], index: 0, kind: input, shape index: {}]
  %s1 = inlined_call_operand.vmem [shape: f32[13,32], index: 1, kind: input, shape index: {}]
  %s2 = inlined_call_operand.vmem [shape: s32[13,1], index: 2, kind: input, shape index: {}]
  %s3 = inlined_call_operand.vmem [shape: f32[16,128], index: 3, kind: output, shape index: {}]
  %s4 = sld [smem:[#allocation0]]
  $region53: #{_forward.1} parent=0
    _
  %s6 = ssub.s32 1, %s4
  %s7 = scalar_select 0, %s6, %s4
  %8 = sst [smem:[#allocation2]] %s0
  loop: start=0, step=1, limit=4
  $region2: #{_forward.1} parent=0 // loop_pre_header
    _
  $region3: #{_forward.1} parent=0 // loop_header
    %s10 = sphi 0, %s14
    %p11 = scmp.ge.s32.totalorder %s10, 4
    %s18 = sphi 0, %s18
    %s20 = sphi 0, %s18
    %s21 = sphi 0, %s20
    %s35 = sphi 0, %s21
    %s41 = sphi 0, %s43
    %s44 = sphi 0, %s41
    %s45 = sphi 0, %s44
    %s61 = sphi 0, %s45
    %s67 = sphi 0, %s69
    %s70 = sphi 0, %s67
    %s71 = sphi 0, %s70
    %s87 = sphi 0, %s71
    %s93 = sphi 0, %s95
    %s96 = sphi 0, %s93
    %s97 = sphi 0, %s96
    %s113 = sphi 0, %s97
  $region4: #{_forward.1} parent=0 // loop_header_branch
    %13 = sbr.rel (%p11) target = $region8
  $region5: #{_forward.1} parent=0 // loop_body
    %s15 = ssub.s32 %s10, 1
    %s16 = ssub.s32 %s10, 2
    %s17 = sadd.s32 %s10, 1
    %s19 = sadd.s32 %s18, 1
    %p22 = scmp.eq.s32.totalorder %s10, 1
    %p23 = scmp.ne.s32.totalorder %s18, %s20
    %p24 = scmp.eq.s32.totalorder %s10, 0
    %p25 = por %p23, %p24
    %p26 = scmp.ne.s32.totalorder %s18, %s20
    %p27 = scmp.eq.s32.totalorder %s15, 1
    %p28 = por %p26, %p27
    %p29 = scmp.ne.s32.totalorder %s20, %s21
    %p30 = scmp.eq.s32.totalorder %s15, 0
    %p31 = por %p29, %p30
    %p32 = scmp.ne.s32.totalorder %s20, %s21
    %p33 = scmp.eq.s32.totalorder %s16, 1
    %p34 = por %p32, %p33
    %p36 = scmp.ne.s32.totalorder %s21, %s35
    %p37 = scmp.eq.s32.totalorder %s16, 0
    %p38 = por %p36, %p37
    %s39 = ssub.s32 %s10, %s17
    %p40 = scmp.eq.s32.totalorder %s39, 0
    %s42 = sadd.s32 %s41, 1
    %s43 = scalar_select %p40, %s41, %s42
    %p46 = pneg %p40
    %p47 = scmp.eq.s32.totalorder %s10, 1
    %p48 = por %p46, %p47
    %p49 = scmp.ne.s32.totalorder %s41, %s44
    %p50 = scmp.eq.s32.totalorder %s10, 0
    %p51 = por %p49, %p50
    %p52 = scmp.ne.s32.totalorder %s41, %s44
    %p53 = scmp.eq.s32.totalorder %s15, 1
    %p54 = por %p52, %p53
    %p55 = scmp.ne.s32.totalorder %s44, %s45
    %p56 = scmp.eq.s32.totalorder %s15, 0
    %p57 = por %p55, %p56
    %p58 = scmp.ne.s32.totalorder %s44, %s45
    %p59 = scmp.eq.s32.totalorder %s16, 1
    %p60 = por %p58, %p59
    %p62 = scmp.ne.s32.totalorder %s45, %s61
    %p63 = scmp.eq.s32.totalorder %s16, 0
    %p64 = por %p62, %p63
    %s65 = ssub.s32 %s10, %s17
    %p66 = scmp.eq.s32.totalorder %s65, 0
    %s68 = sadd.s32 %s67, 1
    %s69 = scalar_select %p66, %s67, %s68
    %p72 = pneg %p66
    %p73 = scmp.eq.s32.totalorder %s10, 1
    %p74 = por %p72, %p73
    %p75 = scmp.ne.s32.totalorder %s67, %s70
    %p76 = scmp.eq.s32.totalorder %s10, 0
    %p77 = por %p75, %p76
    %p78 = scmp.ne.s32.totalorder %s67, %s70
    %p79 = scmp.eq.s32.totalorder %s15, 1
    %p80 = por %p78, %p79
    %p81 = scmp.ne.s32.totalorder %s70, %s71
    %p82 = scmp.eq.s32.totalorder %s15, 0
    %p83 = por %p81, %p82
    %p84 = scmp.ne.s32.totalorder %s70, %s71
    %p85 = scmp.eq.s32.totalorder %s16, 1
    %p86 = por %p84, %p85
    %p88 = scmp.ne.s32.totalorder %s71, %s87
    %p89 = scmp.eq.s32.totalorder %s16, 0
    %p90 = por %p88, %p89
    %s91 = ssub.s32 %s10, %s17
    %p92 = scmp.eq.s32.totalorder %s91, 0
    %s94 = sadd.s32 %s93, 1
    %s95 = scalar_select %p92, %s93, %s94
    %p98 = pneg %p92
    %p99 = scmp.eq.s32.totalorder %s10, 1
    %p100 = por %p98, %p99
    %p101 = scmp.ne.s32.totalorder %s93, %s96
    %p102 = scmp.eq.s32.totalorder %s10, 0
    %p103 = por %p101, %p102
    %p104 = scmp.ne.s32.totalorder %s93, %s96
    %p105 = scmp.eq.s32.totalorder %s15, 1
    %p106 = por %p104, %p105
    %p107 = scmp.ne.s32.totalorder %s96, %s97
    %p108 = scmp.eq.s32.totalorder %s15, 0
    %p109 = por %p107, %p108
    %p110 = scmp.ne.s32.totalorder %s96, %s97
    %p111 = scmp.eq.s32.totalorder %s16, 1
    %p112 = por %p110, %p111
    %p114 = scmp.ne.s32.totalorder %s97, %s113
    %p115 = scmp.eq.s32.totalorder %s16, 0
    %p116 = por %p114, %p115
    %p117 = scmp.le.s32.totalorder 1, %s10
    %p118 = scmp.lt.s32.totalorder %s10, 3
    %p119 = pnand %p117, %p118
    %p120 = pneg %p119
    // Predicated region
    $region9: #{_forward.1} parent=5 // pred_check
      _
    $region10: #{_forward.1} parent=5 // pred_check_branch
      %122 = sbr.rel (%p119) target = $region12
    $region11: #{_forward.1} parent=5 // pred_region
      %s123 = ssub.s32 %s10, 1
      // Predicated region
      $region13: #{_forward.1} parent=11 // pred_check
        %p124 = pneg %p31
      $region14: #{_forward.1} parent=11 // pred_check_branch
        %126 = sbr.rel (%p124) target = $region16
      $region15: #{_forward.1} parent=11 // pred_region
        _
      $region16: #{_forward.1} parent=11 // pred_fallthru
        _
    $region12: #{_forward.1} parent=5 // pred_fallthru
      _
    %p127 = scmp.lt.s32.totalorder %s10, 2
    // Predicated region
    $region17: #{_forward.1} parent=5 // pred_check
      %p128 = pneg %p127
    $region18: #{_forward.1} parent=5 // pred_check_branch
      %130 = sbr.rel (%p128) target = $region20
    $region19: #{_forward.1} parent=5 // pred_region
      // Predicated region
      $region21: #{_forward.1} parent=19 // pred_check
        %p131 = pneg %p51
      $region22: #{_forward.1} parent=19 // pred_check_branch
        %133 = sbr.rel (%p131) target = $region24
      $region23: #{_forward.1} parent=19 // pred_region
        %p134 = scmp.lt.s32.totalorder %s10, 1
        %s135 = scalar_select %p134, %s10, 1
        %s136 = smul.addr %s135, 8
        %s137 = scalar_lea.vmem %s1, %s136
      $region24: #{_forward.1} parent=19 // pred_fallthru
        _
      // Predicated region
      $region25: #{_forward.1} parent=19 // pred_check
        %p138 = pneg %p77
      $region26: #{_forward.1} parent=19 // pred_check_branch
        %140 = sbr.rel (%p138) target = $region28
      $region27: #{_forward.1} parent=19 // pred_region
        %p141 = scmp.lt.s32.totalorder %s10, 1
        %s142 = scalar_select %p141, %s10, 1
        %s143 = smul.addr %s142, 8
        %s144 = scalar_lea.vmem %s2, %s143
      $region28: #{_forward.1} parent=19 // pred_fallthru
        _
    $region20: #{_forward.1} parent=5 // pred_fallthru
      _
    %p145 = scmp.le.s32.totalorder 1, %s10
    %p146 = scmp.lt.s32.totalorder %s10, 3
    %p147 = pnand %p145, %p146
    %p148 = pneg %p147
    // Predicated region
    $region29: #{_forward.1} parent=5 // pred_check
      _
    $region30: #{_forward.1} parent=5 // pred_check_branch
      %150 = sbr.rel (%p147) target = $region32
    $region31: #{_forward.1} parent=5 // pred_region
      %s151 = ssub.s32 %s10, 1
      %p152 = pneg %p31
      %p153 = pneg %p28
      %p154 = scmp.lt.s32.totalorder %s15, 1
      %s155 = scalar_select %p154, %s15, 1
      %s156 = smul.addr %s155, 8
      %s157 = scalar_lea.vmem %s1, %s156
      %p158 = pneg %p57
      %p159 = pneg %p54
      %p160 = scmp.lt.s32.totalorder %s15, 1
      %s161 = scalar_select %p160, %s15, 1
      %s162 = smul.addr %s161, 8
      %s163 = scalar_lea.vmem %s2, %s162
      %p164 = pneg %p83
      %p165 = pneg %p80
      %p166 = pneg %p109
      %p167 = pneg %p106
      %p168 = scmp.lt.s32.totalorder %s15, 1
      %s169 = scalar_select %p168, %s15, 1
      %s170 = smul.addr %s169, 8
      %s171 = scalar_lea.vmem %s3, %s170
      %p172 = scmp.lt.s32.totalorder %s15, 1
      %s173 = scalar_select %p172, %s15, 1
      %s174 = smul.addr %s173, 8
      %s175 = scalar_lea.vmem %s1, %s174
      %p176 = scmp.lt.s32.totalorder %s15, 1
      %s177 = scalar_select %p176, %s15, 1
      %s178 = smul.addr %s177, 8
      %s179 = scalar_lea.vmem %s2, %s178
      %p180 = scmp.lt.s32.totalorder %s15, 1
      %s181 = scalar_select %p180, %s15, 1
      %s182 = smul.addr %s181, 8
      %s183 = scalar_lea.vmem %s3, %s182
      %v184 = vld [vmem:[%s175] sm:$0xff]
      %v185 = vld [vmem:[%s179] sm:$0xff]
      %s186 = sld [smem:[#allocation2]]
      %vm187 = vcmask 261120
      %v188 = vsel %vm187, %v184, -inf
      %189 = vmax.xlane.f32.xlu0 %v188
      %v190 = vpop.xlane.xlu0 %189
      %v191 = vsub.f32 %v184, %v190
      %v192 = vmul.f32 %v191, 1.442695
      %v193 = vpow.pop %v192
      %v194 = vsel %vm187, %v193, 0.0
      %195 = vadd.xlane.f32.xlu0 %v194
      %v196 = vpop.xlane.xlu0 %195
      %v197 = vlog2.pop %v196
      %v198 = vmul.f32 %v197, 0.6931472
      %v199 = vadd.f32 %v198, %v190
      %v200 = vlaneseq
      %v201 = vand.u32 %v200, 127
      %202 = vset.pattern.permute.xlu0 0
      %203 = vperm.xlu0 %202, %v185
      %v204 = vpop.permute.xlu0 %203
      %vm205 = vcmp.eq.s32.totalorder %v201, %v204
      %v206 = vsel %vm205, %v184, 0.0
      %v207 = vsel %vm187, %v206, 0.0
      %208 = vadd.xlane.f32.xlu0 %v207
      %v209 = vpop.xlane.xlu0 %208
      %v210 = vsub.f32 %v199, %v209
      %v211 = vcvt.s32.f32 %v185
      %v212 = vstv %s186
      %v213 = vmul.f32 %v211, %v212
      %v214 = vadd.f32 %v213, 1.0
      %v215 = vmul.f32 %v210, %v214
      %p216 = scmp.eq.s32.totalorder %s15, 1
      %p217 = scmp.ne.s32.totalorder %s15, 1
      // Predicated region
      $region33: #{_forward.1} parent=31 // pred_check
        %p218 = pneg %p217
      $region34: #{_forward.1} parent=31 // pred_check_branch
        %220 = sbr.rel (%p218) target = $region36
      $region35: #{_forward.1} parent=31 // pred_region
        %vm221 = vcmask 7168
        %v222 = vsel %vm221, %v215, 0.0
        %223 = vadd.xlane.f32.xlu0 %v222
        %v224 = vpop.xlane.xlu0 %223
        %v225 = vrot.slane %v224, 4
        %v226 = vadd.f32 %v224, %v225
        %v227 = vrot.slane %v226, 2
        %v228 = vadd.f32 %v226, %v227
        %v229 = vrot.slane %v228, 1
        %v230 = vadd.f32 %v228, %v229
        %s231 = vtos %v230
        %v232 = vstv %s231
        %233 = vst [vmem:[%s183] sm:$0xff] %v232
      $region36: #{_forward.1} parent=31 // pred_fallthru
        _
      // Predicated region
      $region37: #{_forward.1} parent=31 // pred_check
        %p234 = pneg %p216
      $region38: #{_forward.1} parent=31 // pred_check_branch
        %236 = sbr.rel (%p234) target = $region40
      $region39: #{_forward.1} parent=31 // pred_region
        %v237 = vlaneseq
        %v238 = vshrl.u32 %v237, 7
        %vm239 = vcmp.lt.s32.totalorder %v238, 5
        %v240 = vsel %vm239, %v215, 0.0
        %vm241 = vcmask 7168
        %v242 = vsel %vm241, %v240, 0.0
        %243 = vadd.xlane.f32.xlu0 %v242
        %v244 = vpop.xlane.xlu0 %243
        %v245 = vrot.slane %v244, 4
        %v246 = vadd.f32 %v244, %v245
        %v247 = vrot.slane %v246, 2
        %v248 = vadd.f32 %v246, %v247
        %v249 = vrot.slane %v248, 1
        %v250 = vadd.f32 %v248, %v249
        %s251 = vtos %v250
        %v252 = vstv %s251
        %253 = vst [vmem:[%s183] sm:$0xff] %v252
      $region40: #{_forward.1} parent=31 // pred_fallthru
        _
      %p254 = scmp.lt.s32.totalorder %s15, 1
      %s255 = scalar_select %p254, %s15, 1
      %s256 = smul.addr %s255, 8
      %s257 = scalar_lea.vmem %s3, %s256
      // Predicated region
      $region41: #{_forward.1} parent=31 // pred_check
        %p258 = pneg %p106
      $region42: #{_forward.1} parent=31 // pred_check_branch
        %260 = sbr.rel (%p258) target = $region44
      $region43: #{_forward.1} parent=31 // pred_region
        _
      $region44: #{_forward.1} parent=31 // pred_fallthru
        _
    $region32: #{_forward.1} parent=5 // pred_fallthru
      _
    %p261 = scmp.le.s32.totalorder 2, %s10
    // Predicated region
    $region45: #{_forward.1} parent=5 // pred_check
      %p262 = pneg %p261
    $region46: #{_forward.1} parent=5 // pred_check_branch
      %264 = sbr.rel (%p262) target = $region48
    $region47: #{_forward.1} parent=5 // pred_region
      %s265 = ssub.s32 %s10, 2
      // Predicated region
      $region49: #{_forward.1} parent=47 // pred_check
        %p266 = pneg %p112
      $region50: #{_forward.1} parent=47 // pred_check_branch
        %268 = sbr.rel (%p266) target = $region52
      $region51: #{_forward.1} parent=47 // pred_region
        %p269 = scmp.lt.s32.totalorder %s16, 1
        %s270 = scalar_select %p269, %s16, 1
        %s271 = smul.addr %s270, 8
        %s272 = scalar_lea.vmem %s3, %s271
      $region52: #{_forward.1} parent=47 // pred_fallthru
        _
    $region48: #{_forward.1} parent=5 // pred_fallthru
      _
  $region6: #{_forward.1} parent=0 // loop_footer
    %s14 = sadd.s32 1, %s10
  $region7: #{_forward.1} parent=0 // loop_footer_branch
    %9 = sbr.rel target = $region3
  $region8: #{_forward.1} parent=0 // loop_exit
    _

</llo_original>
